<compile_context>
chip_gen: v7x
topology: tpu7x:2x2x1
jax: 0.10.0
libtpu: 0.0.40
codegen_flags: <defaults>
</compile_context>

<pallas_src>
import numpy as np
import jax
import jax.numpy as jnp
from jax.experimental import pallas as pl
from jax.experimental.pallas import tpu as pltpu


# ----------------------------------------------------------------------------
# Deterministic parameter construction (mirrors Audio2Mel.__init__)
# ----------------------------------------------------------------------------
def _hz_to_mel(f):
    # Slaney mel scale (librosa default)
    f = np.asarray(f, dtype=np.float64)
    f_min, f_sp = 0.0, 200.0 / 3
    mels = (f - f_min) / f_sp
    min_log_hz = 1000.0
    min_log_mel = (min_log_hz - f_min) / f_sp
    logstep = np.log(6.4) / 27.0
    if mels.ndim:
        log_t = f >= min_log_hz
        mels[log_t] = min_log_mel + np.log(f[log_t] / min_log_hz) / logstep
    elif f >= min_log_hz:
        mels = min_log_mel + np.log(f / min_log_hz) / logstep
    return mels


def _mel_to_hz(m):
    m = np.asarray(m, dtype=np.float64)
    f_min, f_sp = 0.0, 200.0 / 3
    freqs = f_min + f_sp * m
    min_log_hz = 1000.0
    min_log_mel = (min_log_hz - f_min) / f_sp
    logstep = np.log(6.4) / 27.0
    log_t = m >= min_log_mel
    freqs[log_t] = min_log_hz * np.exp(logstep * (m[log_t] - min_log_mel))
    return freqs


def librosa_mel_fn(sr, n_fft, n_mels, fmin, fmax):
    # librosa.filters.mel with Slaney scale + Slaney normalization (defaults).
    if fmax is None:
        fmax = sr / 2.0
    n_freq = n_fft // 2 + 1
    fftfreqs = np.linspace(0.0, sr / 2.0, n_freq)
    mel_pts = _mel_to_hz(np.linspace(_hz_to_mel(fmin), _hz_to_mel(fmax), n_mels + 2))
    fdiff = np.diff(mel_pts)
    ramps = mel_pts[:, None] - fftfreqs[None, :]
    weights = np.zeros((n_mels, n_freq), dtype=np.float64)
    for i in range(n_mels):
        lower = -ramps[i] / fdiff[i]
        upper = ramps[i + 2] / fdiff[i + 1]
        weights[i] = np.maximum(0.0, np.minimum(lower, upper))
    enorm = 2.0 / (mel_pts[2: n_mels + 2] - mel_pts[:n_mels])
    weights *= enorm[:, None]
    return weights.astype(np.float32)


def hann_window(win_length):
    # torch.hann_window default is periodic=True
    n = np.arange(win_length)
    return (0.5 - 0.5 * np.cos(2.0 * np.pi * n / win_length)).astype(np.float32)


def _round_up(x, m):
    return ((x + m - 1) // m) * m


# ----------------------------------------------------------------------------
# Pallas kernel: per (batch, frame-tile):
#   rebuild the (TM, n_fft) frame tile once from hop-chunks, one long-K MXU
#   matmul against the fused window*[cos | -sin] constant, magnitude,
#   mel matmul, log10 clamp, in-kernel transpose to (n_mel_pad, TM).
# ----------------------------------------------------------------------------
def _make_audio2mel_kernel(r, hop, tm, nfp, compute_dtype):
    def kernel(main_ref, tail_ref, wdft_ref, melT_ref, out_ref):
        # main_ref: (1, TM, hop)    chunks  m*TM .. m*TM + TM - 1
        # tail_ref: (1, TAIL, hop)  chunks  (m+1)*TM .. (m+1)*TM + TAIL - 1
        full = jnp.concatenate([main_ref[0], tail_ref[0]], axis=0)  # (TM+TAIL, hop)
        full = full.astype(compute_dtype)

        # Frame f = concat_c chunk[f + c]; the Hann window is already folded
        # into wdft ((x*w)@C == x@(diag(w)@C)).  Build the frame tile once and
        # issue a single K = n_fft contraction (no accumulator RMW loop).
        frames = jnp.concatenate([full[c:c + tm, :] for c in range(r)], axis=1)  # (TM, n_fft)
        acc = jnp.dot(frames, wdft_ref[...],
                      preferred_element_type=jnp.float32)            # (TM, 2*nfp) f32

        real = acc[:, :nfp]
        imag = acc[:, nfp:]
        mag = jnp.sqrt(real * real + imag * imag)                    # (TM, nfp) f32
        mel = jnp.dot(mag.astype(compute_dtype), melT_ref[...],
                      preferred_element_type=jnp.float32)            # (TM, n_mel_pad) f32
        log_mel = jnp.log10(jnp.maximum(mel, 1e-5))
        out_ref[0] = log_mel.T                                       # (n_mel_pad, TM)

    return kernel


class Audio2MelPallas:
    TAIL = 8  # extra chunk rows fetched per tile to cover the r-1 frame overlap

    def __init__(self, n_fft=1024, hop_length=256, win_length=1024,
                 sampling_rate=22050, n_mel_channels=240,
                 mel_fmin=0.0, mel_fmax=None, compute_dtype=jnp.bfloat16):
        # compute_dtype=jnp.bfloat16 (default) runs both matmuls on the bf16
        # MXU path with f32 accumulation (typical |log-mel error| ~1e-2 vs the
        # f64 reference).  Pass jnp.float32 for closer numerical parity.
        assert win_length == n_fft, "kernel assumes win_length == n_fft (module default)"
        assert n_fft % hop_length == 0, "kernel assumes hop_length divides n_fft"
        r = n_fft // hop_length
        assert 1 <= r <= self.TAIL + 1, "kernel assumes n_fft/hop_length <= 9"

        self.n_fft = n_fft
        self.hop_length = hop_length
        self.win_length = win_length
        self.sampling_rate = sampling_rate
        self.n_mel_channels = n_mel_channels
        self.compute_dtype = compute_dtype

        self.n_freq = n_fft // 2 + 1

        mel_basis = librosa_mel_fn(sampling_rate, n_fft, n_mel_channels,
                                   mel_fmin, mel_fmax)                # (n_mel, n_freq)

        # The Nyquist FFT bin has (numerically) zero mel weight whenever
        # mel_fmax <= sr/2 (always true for the Slaney construction with the
        # module defaults), so drop it from the matmuls: freq half-width pads
        # to 512 instead of 640 (~20% fewer DFT FLOPs).  Fall back to keeping
        # it (pad 640) if some config ever gives it a nonzero weight.
        nyq_w = float(np.abs(mel_basis[:, -1]).max())
        if nyq_w <= 1e-10 * max(float(np.abs(mel_basis).max()), 1e-30):
            self.n_freq_used = self.n_freq - 1
        else:
            self.n_freq_used = self.n_freq
        self.n_freq_pad = _round_up(self.n_freq_used, 128)   # lane-dense freq axis
        self.n_mel_pad = _round_up(n_mel_channels, 128)       # lane-dense mel axis

        # Fused DFT constant: Hann window folded in, cos | -sin concatenated,
        # zero-padded freq columns (inert: sqrt(0)=0 and melT rows are zero).
        window = hann_window(win_length).astype(np.float64)
        n = np.arange(n_fft)[:, None]
        f = np.arange(self.n_freq_used)[None, :]
        ang = 2.0 * np.pi * n * f / n_fft
        wdft = np.zeros((n_fft, 2 * self.n_freq_pad), dtype=np.float32)
        wdft[:, :self.n_freq_used] = window[:, None] * np.cos(ang)
        wdft[:, self.n_freq_pad:self.n_freq_pad + self.n_freq_used] = (
            window[:, None] * (-np.sin(ang)))
        self.wdft = jnp.asarray(wdft, dtype=compute_dtype)    # (n_fft, 2*nfp)

        melT = np.zeros((self.n_freq_pad, self.n_mel_pad), dtype=np.float32)
        melT[:self.n_freq_used, :n_mel_channels] = mel_basis[:, :self.n_freq_used].T
        self.melT = jnp.asarray(melT, dtype=compute_dtype)    # (nfp, n_mel_pad)

    def __call__(self, audio):
        # audio: (B, 1, T) float32 — same as the PyTorch module input
        B = audio.shape[0]
        n_fft, hop = self.n_fft, self.hop_length
        r = n_fft // hop
        nfp, n_mel_pad = self.n_freq_pad, self.n_mel_pad

        p = (n_fft - hop) // 2
        x = jnp.pad(audio, ((0, 0), (0, 0), (p, p)), mode="reflect")[:, 0, :]  # (B, T_pad)
        T_pad = x.shape[-1]
        n_frames = 1 + (T_pad - n_fft) // hop
        assert n_frames >= 1, "input too short for one frame"

        # Frame-axis tiling: TM multiple of 128 so the transposed output tile
        # is lane-dense.  Up to 512 frames per tile (fits VMEM comfortably in
        # bf16 on v7x's 64 MiB and trivially on v5e/v6e's 128 MiB), reduced if
        # needed so B*num_tiles >= 2 keeps both v7x TensorCores busy.
        TM = min(512, _round_up(n_frames, 128))
        while TM > 128 and B * pl.cdiv(n_frames, TM) < 2:
            TM -= 128
        num_tiles = pl.cdiv(n_frames, TM)
        n_frames_pad = num_tiles * TM

        # hop-sized chunks (no 4x framed-tensor materialization): frame f uses
        # chunks f .. f+r-1.  Zero-pad at the end so every block is in-bounds;
        # the extra frames are garbage-free (zeros) and sliced off below.
        n_chunks = n_frames_pad + self.TAIL
        total_samples = n_chunks * hop
        pad_amt = total_samples - T_pad
        if pad_amt >= 0:
            x = jnp.pad(x, ((0, 0), (0, pad_amt)))
        else:
            x = x[:, :total_samples]
        x_chunks = x.reshape(B, n_chunks, hop)

        kernel = _make_audio2mel_kernel(r, hop, TM, nfp, self.compute_dtype)

        tail_blocks_per_tile = TM // self.TAIL

        def main_index_map(b, m):
            return (b, m, 0)

        def tail_index_map(b, m):
            return (b, (m + 1) * tail_blocks_per_tile, 0)

        def const_index_map(b, m):
            return (0, 0)

        def out_index_map(b, m):
            return (b, 0, m)

        cbytes = jnp.dtype(self.compute_dtype).itemsize
        # Advisory cost estimate for the XLA scheduler.
        flops = 2 * B * n_frames_pad * (n_fft * 2 * nfp + nfp * n_mel_pad)
        transcendentals = B * n_frames_pad * (nfp + n_mel_pad)
        bytes_accessed = (B * n_chunks * hop * 4
                          + (n_fft * 2 * nfp + nfp * n_mel_pad) * cbytes
                          + B * n_mel_pad * n_frames_pad * 4)

        # VMEM budget from tile arithmetic: double-buffered I/O + constants +
        # kernel intermediates (x2 margin), clamped to [32 MiB, 48 MiB] so it
        # stays well under v7x's 64 MiB physical VMEM.
        const_bytes = 2 * (self.wdft.size + self.melT.size) * cbytes
        io_bytes = 2 * 4 * (TM * hop + self.TAIL * hop + n_mel_pad * TM)
        inter_bytes = ((TM + self.TAIL) * hop * (4 + cbytes)   # full f32 + cast
                       + TM * n_fft * cbytes                   # frame tile
                       + TM * 2 * nfp * 4                      # acc (real|imag)
                       + TM * nfp * (4 + cbytes)               # mag f32 + cast
                       + 3 * TM * n_mel_pad * 4)               # mel, log, transpose
        vmem_limit = int(min(48 * 1024 * 1024,
                             max(32 * 1024 * 1024,
                                 const_bytes + io_bytes + 2 * inter_bytes)))

        out = pl.pallas_call(
            kernel,
            out_shape=jax.ShapeDtypeStruct((B, n_mel_pad, n_frames_pad), jnp.float32),
            grid_spec=pltpu.PrefetchScalarGridSpec(
                num_scalar_prefetch=0,
                grid=(B, num_tiles),
                in_specs=[
                    pl.BlockSpec((1, TM, hop), main_index_map),
                    pl.BlockSpec((1, self.TAIL, hop), tail_index_map),
                    pl.BlockSpec((n_fft, 2 * nfp), const_index_map),
                    pl.BlockSpec((nfp, n_mel_pad), const_index_map),
                ],
                out_specs=pl.BlockSpec((1, n_mel_pad, TM), out_index_map),
            ),
            compiler_params=pltpu.CompilerParams(
                dimension_semantics=("parallel", "parallel"),
                vmem_limit_bytes=vmem_limit),
            cost_estimate=pl.CostEstimate(
                flops=int(flops),
                transcendentals=int(transcendentals),
                bytes_accessed=int(bytes_accessed)),
        )(x_chunks, x_chunks, self.wdft, self.melT)

        # Output already in PyTorch layout (B, n_mel, n_frames); drop padding.
        # (One extra HBM pass; negligible since the kernel is MXU-bound.)
        return out[:, :self.n_mel_channels, :n_frames]


# ----------------------------------------------------------------------------
# Pure NumPy float64 reference (mirrors the PyTorch forward) for validation.
# ----------------------------------------------------------------------------
def _reference_log_mel(audio_np, n_fft, hop, n_mel, sr, fmin=0.0, fmax=None):
    p = (n_fft - hop) // 2
    x = np.pad(audio_np[:, 0, :].astype(np.float64), ((0, 0), (p, p)), mode="reflect")
    w = hann_window(n_fft).astype(np.float64)
    B, T_pad = x.shape
    n_frames = 1 + (T_pad - n_fft) // hop
    idx = np.arange(n_frames)[:, None] * hop + np.arange(n_fft)[None, :]
    frames = x[:, idx] * w[None, None, :]                    # (B, n_frames, n_fft)
    spec = np.fft.rfft(frames, n=n_fft, axis=-1)
    mag = np.abs(spec)                                       # (B, n_frames, n_freq)
    mel_basis = librosa_mel_fn(sr, n_fft, n_mel, fmin, fmax).astype(np.float64)
    mel = np.einsum("mf,bnf->bmn", mel_basis, mag)           # (B, n_mel, n_frames)
    return np.log10(np.maximum(mel, 1e-5))


if __name__ == "__main__":
    # Small-shape instance consistent with the module's forward.
    n_fft, hop, n_mel, sr = 128, 32, 32, 22050
    model = Audio2MelPallas(n_fft=n_fft, hop_length=hop, win_length=n_fft,
                            sampling_rate=sr, n_mel_channels=n_mel,
                            mel_fmin=0.0, mel_fmax=None)

    key = jax.random.PRNGKey(0)
    B, T = 2, 256
    audio = jax.random.normal(key, (B, 1, T), dtype=jnp.float32)

    log_mel = model(audio)
    jax.block_until_ready(log_mel)

    # expected: (B, n_mel, 1 + (T + 2*p - n_fft)//hop) = (2, 32, 8)
    p = (n_fft - hop) // 2
    expected_frames = 1 + (T + 2 * p - n_fft) // hop
    assert log_mel.shape == (B, n_mel, expected_frames), log_mel.shape

    # Numerical check against a float64 NumPy reference of the PyTorch forward.
    # Tolerance sized for the bf16 MXU path (typical |error| ~1e-2 in log-mel).
    ref = _reference_log_mel(np.asarray(audio), n_fft, hop, n_mel, sr)
    np.testing.assert_allclose(np.asarray(log_mel), ref, atol=7.5e-2, rtol=5e-2)

    print("KERNEL_OK")
</pallas_src>

<mosaic_0001>
module attributes {stable_mosaic.version = 11 : i64} {
  func.func @kernel(%arg0: i32, %arg1: i32, %arg2: memref<1x128x32xf32, #tpu.memory_space<vmem>>, %arg3: memref<1x8x32xf32, #tpu.memory_space<vmem>>, %arg4: memref<128x256xbf16, #tpu.memory_space<vmem>>, %arg5: memref<128x128xbf16, #tpu.memory_space<vmem>>, %arg6: memref<1x128x128xf32, #tpu.memory_space<vmem>>) attributes {dimension_semantics = [#tpu.dimension_semantics<parallel>, #tpu.dimension_semantics<parallel>], iteration_bounds = array<i64: 2, 1>, scalar_prefetch = 0 : i64, scratch_operands = 0 : i64, tpu.core_type = #tpu.core_type<tc>, window_params = [{transform_indices = @transform_0, window_bounds = array<i64: 1, 128, 32>}, {transform_indices = @transform_1, window_bounds = array<i64: 1, 8, 32>}, {pipeline_mode = #tpu.pipeline_mode<synchronous>, transform_indices = @transform_2, window_bounds = array<i64: 128, 256>}, {pipeline_mode = #tpu.pipeline_mode<synchronous>, transform_indices = @transform_3, window_bounds = array<i64: 128, 128>}, {transform_indices = @transform_4, window_bounds = array<i64: 1, 128, 128>}]} {
    %c0 = arith.constant 0 : index
    %c0_0 = arith.constant 0 : index
    %c0_1 = arith.constant 0 : index
    %0 = vector.load %arg2[%c0, %c0_0, %c0_1] : memref<1x128x32xf32, #tpu.memory_space<vmem>>, vector<1x128x32xf32>
    %1 = vector.shape_cast %0 : vector<1x128x32xf32> to vector<128x32xf32>
    %c0_2 = arith.constant 0 : index
    %c0_3 = arith.constant 0 : index
    %c0_4 = arith.constant 0 : index
    %2 = vector.load %arg3[%c0_2, %c0_3, %c0_4] : memref<1x8x32xf32, #tpu.memory_space<vmem>>, vector<1x8x32xf32>
    %3 = vector.shape_cast %2 : vector<1x8x32xf32> to vector<8x32xf32>
    %4 = tpu.concatenate %1, %3 in 0 : vector<128x32xf32>, vector<8x32xf32> -> vector<136x32xf32>
    %5 = arith.truncf %4 : vector<136x32xf32> to vector<136x32xbf16>
    %6 = vector.extract_strided_slice %5 {offsets = [0, 0], sizes = [128, 32], strides = [1, 1]} : vector<136x32xbf16> to vector<128x32xbf16>
    %7 = vector.extract_strided_slice %5 {offsets = [1, 0], sizes = [128, 32], strides = [1, 1]} : vector<136x32xbf16> to vector<128x32xbf16>
    %8 = vector.extract_strided_slice %5 {offsets = [2, 0], sizes = [128, 32], strides = [1, 1]} : vector<136x32xbf16> to vector<128x32xbf16>
    %9 = vector.extract_strided_slice %5 {offsets = [3, 0], sizes = [128, 32], strides = [1, 1]} : vector<136x32xbf16> to vector<128x32xbf16>
    %10 = tpu.concatenate %6, %7, %8, %9 in 1 : vector<128x32xbf16>, vector<128x32xbf16>, vector<128x32xbf16>, vector<128x32xbf16> -> vector<128x128xbf16>
    %c0_5 = arith.constant 0 : index
    %c0_6 = arith.constant 0 : index
    %11 = vector.load %arg4[%c0_5, %c0_6] : memref<128x256xbf16, #tpu.memory_space<vmem>>, vector<128x256xbf16>
    %cst = arith.constant dense<0.000000e+00> : vector<128x256xf32>
    %12 = tpu.matmul %10, %11, %cst {dimension_numbers = #tpu.dot_dimension_numbers<[1], [0], [0], [1], [0, 0, 1, 1], [], []>} : vector<128x128xbf16>, vector<128x256xbf16>, vector<128x256xf32> -> vector<128x256xf32>
    %13 = vector.extract_strided_slice %12 {offsets = [0, 0], sizes = [128, 128], strides = [1, 1]} : vector<128x256xf32> to vector<128x128xf32>
    %14 = vector.extract_strided_slice %12 {offsets = [0, 128], sizes = [128, 128], strides = [1, 1]} : vector<128x256xf32> to vector<128x128xf32>
    %15 = arith.mulf %13, %13 : vector<128x128xf32>
    %16 = arith.mulf %14, %14 : vector<128x128xf32>
    %17 = arith.addf %15, %16 : vector<128x128xf32>
    %18 = math.sqrt %17 : vector<128x128xf32>
    %19 = arith.truncf %18 : vector<128x128xf32> to vector<128x128xbf16>
    %c0_7 = arith.constant 0 : index
    %c0_8 = arith.constant 0 : index
    %20 = vector.load %arg5[%c0_7, %c0_8] : memref<128x128xbf16, #tpu.memory_space<vmem>>, vector<128x128xbf16>
    %cst_9 = arith.constant dense<0.000000e+00> : vector<128x128xf32>
    %21 = tpu.matmul %19, %20, %cst_9 {dimension_numbers = #tpu.dot_dimension_numbers<[1], [0], [0], [1], [0, 0, 1, 1], [], []>} : vector<128x128xbf16>, vector<128x128xbf16>, vector<128x128xf32> -> vector<128x128xf32>
    %cst_10 = arith.constant 9.99999974E-6 : f32
    %22 = vector.broadcast %cst_10 : f32 to vector<128x128xf32>
    %23 = arith.maximumf %21, %22 : vector<128x128xf32>
    %24 = math.log %23 : vector<128x128xf32>
    %cst_11 = arith.constant 0.434294492 : f32
    %25 = vector.broadcast %cst_11 : f32 to vector<128x128xf32>
    %26 = arith.mulf %24, %25 : vector<128x128xf32>
    %27 = tpu.transpose %26, [1, 0] : vector<128x128xf32> -> vector<128x128xf32>
    %c0_12 = arith.constant 0 : index
    %c0_13 = arith.constant 0 : index
    %c0_14 = arith.constant 0 : index
    %28 = vector.load %arg6[%c0_12, %c0_13, %c0_14] : memref<1x128x128xf32, #tpu.memory_space<vmem>>, vector<1x128x128xf32>
    %29 = vector.shape_cast %28 : vector<1x128x128xf32> to vector<128x128xf32>
    %30 = vector.shape_cast %27 : vector<128x128xf32> to vector<1x128x128xf32>
    tpu.vector_store %arg6[%c0_12, %c0_13, %c0_14], %30 {strides = array<i32>} : memref<1x128x128xf32, #tpu.memory_space<vmem>>, vector<1x128x128xf32>,
    return
  }
  func.func @transform_0(%arg0: i32, %arg1: i32) -> (i32, i32, i32) {
    %c0_i32 = arith.constant 0 : i32
    %c0_i32_0 = arith.constant 0 : i32
    return %arg0, %arg1, %c0_i32 : i32, i32, i32
  }
  func.func @transform_1(%arg0: i32, %arg1: i32) -> (i32, i32, i32) {
    %c1_i32 = arith.constant 1 : i32
    %0 = arith.addi %arg1, %c1_i32 : i32
    %c16_i32 = arith.constant 16 : i32
    %1 = arith.muli %0, %c16_i32 : i32
    %c0_i32 = arith.constant 0 : i32
    %c0_i32_0 = arith.constant 0 : i32
    return %arg0, %1, %c0_i32 : i32, i32, i32
  }
  func.func @transform_2(%arg0: i32, %arg1: i32) -> (i32, i32) {
    %c0_i32 = arith.constant 0 : i32
    %c0_i32_0 = arith.constant 0 : i32
    %c0_i32_1 = arith.constant 0 : i32
    return %c0_i32, %c0_i32_0 : i32, i32
  }
  func.func @transform_3(%arg0: i32, %arg1: i32) -> (i32, i32) {
    %c0_i32 = arith.constant 0 : i32
    %c0_i32_0 = arith.constant 0 : i32
    %c0_i32_1 = arith.constant 0 : i32
    return %c0_i32, %c0_i32_0 : i32, i32
  }
  func.func @transform_4(%arg0: i32, %arg1: i32) -> (i32, i32, i32) {
    %c0_i32 = arith.constant 0 : i32
    %c0_i32_0 = arith.constant 0 : i32
    return %arg0, %c0_i32, %arg1 : i32, i32, i32
  }
}

</mosaic_0001>

<llo_original>
// kernel: tpu_custom_call.1
$region0: #{tpu_custom_call.1}
  #allocation0 [shape = 'u32[]', space=smem, size = 0x4, offset = 0x4, fixed_abs, tag = 'smem constant byte address 0x4 - core index']
  #allocation1 [shape = 'u32[144,128]{1,0:T(1,128)}', space=vmem, size = 0x12000, scoped, tag = 'internal scratch']
  %s0 = inlined_call_operand.vmem [shape: f32[2,136,32], index: 0, kind: input, shape index: {}]
  %s1 = inlined_call_operand.vmem [shape: f32[2,136,32], index: 1, kind: input, shape index: {}]
  %s2 = inlined_call_operand.vmem [shape: bf16[128,256], index: 2, kind: input, shape index: {}]
  %s3 = inlined_call_operand.vmem [shape: bf16[128,128], index: 3, kind: input, shape index: {}]
  %s4 = inlined_call_operand.hbm [shape: f32[2,128,128], index: 4, kind: output, shape index: {}]
  %s5 = sld [smem:[#allocation0]]
  $region49: #{tpu_custom_call.1} parent=0
    _
  %s7 = ssub.s32 1, %s5
  %s8 = scalar_select 0, %s7, %s5
  $region1: #{tpu_custom_call.1} parent=0
    #allocation2 [shape = 'u8[131072]{0}', space=vmem, size = 0x20000, scoped, tag = 'output window, operand 0']
    #allocation3 [shape = 's32[2]{0}', space=sflag, size = 0x8, scoped, tag = 'scoped memory for tpu_custom_call.1']
    %9 = vsyncpa [#allocation3], 0
    %s10 = scalar_lea.sflag [#allocation3], 1
    %11 = vsyncpa %s10, 0
    loop: start=0, step=1, limit=4
    $region2: #{tpu_custom_call.1} parent=1 // loop_pre_header
      _
    $region3: #{tpu_custom_call.1} parent=1 // loop_header
      %s13 = sphi 0, %s17
      %p14 = scmp.ge.s32.totalorder %s13, 4
      %s20 = sphi 0, %s32
      %s21 = sphi 0, %s28
      %s22 = sphi 0, %s20
      %s23 = sphi 0, %s21
      %s24 = sphi 0, %s22
      %s25 = sphi 0, %s23
      %s37 = sphi 0, %s39
      %s40 = sphi 0, %s37
      %s41 = sphi 0, %s40
      %s57 = sphi 0, %s41
      %s69 = sphi 0, %s71
      %s72 = sphi 0, %s69
      %s73 = sphi 0, %s72
      %s89 = sphi 0, %s73
      %s93 = sphi 0, %s93
      %s95 = sphi 0, %s93
      %s96 = sphi 0, %s95
      %s110 = sphi 0, %s96
      %s114 = sphi 0, %s114
      %s116 = sphi 0, %s114
      %s117 = sphi 0, %s116
      %s131 = sphi 0, %s117
      %s139 = sphi 0, %s141
      %s142 = sphi 0, %s139
      %s143 = sphi 0, %s142
      %s159 = sphi 0, %s143
    $region4: #{tpu_custom_call.1} parent=1 // loop_header_branch
      %16 = sbr.rel (%p14) target = $region8
    $region5: #{tpu_custom_call.1} parent=1 // loop_body
      %s18 = ssub.s32 %s13, 1
      %s19 = ssub.s32 %s13, 2
      %s26 = sadd.s32 1, %s21
      %p27 = scmp.ge.s32.totalorder %s26, 1
      %s28 = scalar_select %p27, 0, %s26
      %s29 = sadd.s32 1, %s20
      %s30 = scalar_select %p27, %s29, %s20
      %p31 = scmp.ge.s32.totalorder %s30, 2
      %s32 = scalar_select %p31, 0, %s30
      %s33 = ssub.s32 %s20, %s32
      %s34 = ssub.s32 %s21, %s28
      %s35 = sor.u32 %s33, %s34
      %p36 = scmp.eq.s32.totalorder %s35, 0
      %s38 = sadd.s32 %s37, 1
      %s39 = scalar_select %p36, %s37, %s38
      %p42 = pneg %p36
      %p43 = scmp.eq.s32.totalorder %s13, 1
      %p44 = por %p42, %p43
      %p45 = scmp.ne.s32.totalorder %s37, %s40
      %p46 = scmp.eq.s32.totalorder %s13, 0
      %p47 = por %p45, %p46
      %p48 = scmp.ne.s32.totalorder %s37, %s40
      %p49 = scmp.eq.s32.totalorder %s18, 1
      %p50 = por %p48, %p49
      %p51 = scmp.ne.s32.totalorder %s40, %s41
      %p52 = scmp.eq.s32.totalorder %s18, 0
      %p53 = por %p51, %p52
      %p54 = scmp.ne.s32.totalorder %s40, %s41
      %p55 = scmp.eq.s32.totalorder %s19, 1
      %p56 = por %p54, %p55
      %p58 = scmp.ne.s32.totalorder %s41, %s57
      %p59 = scmp.eq.s32.totalorder %s19, 0
      %p60 = por %p58, %p59
      %s61 = sadd.s32 %s21, 1
      %s62 = smul.u32 %s61, 16
      %s63 = sadd.s32 %s28, 1
      %s64 = smul.u32 %s63, 16
      %s65 = ssub.s32 %s20, %s32
      %s66 = ssub.s32 %s62, %s64
      %s67 = sor.u32 %s65, %s66
      %p68 = scmp.eq.s32.totalorder %s67, 0
      %s70 = sadd.s32 %s69, 1
      %s71 = scalar_select %p68, %s69, %s70
      %p74 = pneg %p68
      %p75 = scmp.eq.s32.totalorder %s13, 1
      %p76 = por %p74, %p75
      %p77 = scmp.ne.s32.totalorder %s69, %s72
      %p78 = scmp.eq.s32.totalorder %s13, 0
      %p79 = por %p77, %p78
      %p80 = scmp.ne.s32.totalorder %s69, %s72
      %p81 = scmp.eq.s32.totalorder %s18, 1
      %p82 = por %p80, %p81
      %p83 = scmp.ne.s32.totalorder %s72, %s73
      %p84 = scmp.eq.s32.totalorder %s18, 0
      %p85 = por %p83, %p84
      %p86 = scmp.ne.s32.totalorder %s72, %s73
      %p87 = scmp.eq.s32.totalorder %s19, 1
      %p88 = por %p86, %p87
      %p90 = scmp.ne.s32.totalorder %s73, %s89
      %p91 = scmp.eq.s32.totalorder %s19, 0
      %p92 = por %p90, %p91
      %s94 = sadd.s32 %s93, 1
      %p97 = scmp.eq.s32.totalorder %s13, 1
      %p98 = scmp.ne.s32.totalorder %s93, %s95
      %p99 = scmp.eq.s32.totalorder %s13, 0
      %p100 = por %p98, %p99
      %p101 = scmp.ne.s32.totalorder %s93, %s95
      %p102 = scmp.eq.s32.totalorder %s18, 1
      %p103 = por %p101, %p102
      %p104 = scmp.ne.s32.totalorder %s95, %s96
      %p105 = scmp.eq.s32.totalorder %s18, 0
      %p106 = por %p104, %p105
      %p107 = scmp.ne.s32.totalorder %s95, %s96
      %p108 = scmp.eq.s32.totalorder %s19, 1
      %p109 = por %p107, %p108
      %p111 = scmp.ne.s32.totalorder %s96, %s110
      %p112 = scmp.eq.s32.totalorder %s19, 0
      %p113 = por %p111, %p112
      %s115 = sadd.s32 %s114, 1
      %p118 = scmp.eq.s32.totalorder %s13, 1
      %p119 = scmp.ne.s32.totalorder %s114, %s116
      %p120 = scmp.eq.s32.totalorder %s13, 0
      %p121 = por %p119, %p120
      %p122 = scmp.ne.s32.totalorder %s114, %s116
      %p123 = scmp.eq.s32.totalorder %s18, 1
      %p124 = por %p122, %p123
      %p125 = scmp.ne.s32.totalorder %s116, %s117
      %p126 = scmp.eq.s32.totalorder %s18, 0
      %p127 = por %p125, %p126
      %p128 = scmp.ne.s32.totalorder %s116, %s117
      %p129 = scmp.eq.s32.totalorder %s19, 1
      %p130 = por %p128, %p129
      %p132 = scmp.ne.s32.totalorder %s117, %s131
      %p133 = scmp.eq.s32.totalorder %s19, 0
      %p134 = por %p132, %p133
      %s135 = ssub.s32 %s20, %s32
      %s136 = ssub.s32 %s21, %s28
      %s137 = sor.u32 %s135, %s136
      %p138 = scmp.eq.s32.totalorder %s137, 0
      %s140 = sadd.s32 %s139, 1
      %s141 = scalar_select %p138, %s139, %s140
      %p144 = pneg %p138
      %p145 = scmp.eq.s32.totalorder %s13, 1
      %p146 = por %p144, %p145
      %p147 = scmp.ne.s32.totalorder %s139, %s142
      %p148 = scmp.eq.s32.totalorder %s13, 0
      %p149 = por %p147, %p148
      %p150 = scmp.ne.s32.totalorder %s139, %s142
      %p151 = scmp.eq.s32.totalorder %s18, 1
      %p152 = por %p150, %p151
      %p153 = scmp.ne.s32.totalorder %s142, %s143
      %p154 = scmp.eq.s32.totalorder %s18, 0
      %p155 = por %p153, %p154
      %p156 = scmp.ne.s32.totalorder %s142, %s143
      %p157 = scmp.eq.s32.totalorder %s19, 1
      %p158 = por %p156, %p157
      %p160 = scmp.ne.s32.totalorder %s143, %s159
      %p161 = scmp.eq.s32.totalorder %s19, 0
      %p162 = por %p160, %p161
      %p163 = scmp.le.s32.totalorder 1, %s13
      %p164 = scmp.lt.s32.totalorder %s13, 3
      %p165 = pnand %p163, %p164
      %p166 = pneg %p165
      // Predicated region
      $region9: #{tpu_custom_call.1} parent=5 // pred_check
        _
      $region10: #{tpu_custom_call.1} parent=5 // pred_check_branch
        %168 = sbr.rel (%p165) target = $region12
      $region11: #{tpu_custom_call.1} parent=5 // pred_region
        %s169 = ssub.s32 %s13, 1
        // Predicated region
        $region13: #{tpu_custom_call.1} parent=11 // pred_check
          %p170 = pneg %p106
        $region14: #{tpu_custom_call.1} parent=11 // pred_check_branch
          %172 = sbr.rel (%p170) target = $region16
        $region15: #{tpu_custom_call.1} parent=11 // pred_region
          _
        $region16: #{tpu_custom_call.1} parent=11 // pred_fallthru
          _
        // Predicated region
        $region17: #{tpu_custom_call.1} parent=11 // pred_check
          %p173 = pneg %p127
        $region18: #{tpu_custom_call.1} parent=11 // pred_check_branch
          %175 = sbr.rel (%p173) target = $region20
        $region19: #{tpu_custom_call.1} parent=11 // pred_region
          _
        $region20: #{tpu_custom_call.1} parent=11 // pred_fallthru
          _
      $region12: #{tpu_custom_call.1} parent=5 // pred_fallthru
        _
      %p176 = scmp.lt.s32.totalorder %s13, 2
      // Predicated region
      $region21: #{tpu_custom_call.1} parent=5 // pred_check
        %p177 = pneg %p176
      $region22: #{tpu_custom_call.1} parent=5 // pred_check_branch
        %179 = sbr.rel (%p177) target = $region24
      $region23: #{tpu_custom_call.1} parent=5 // pred_region
        // Predicated region
        $region25: #{tpu_custom_call.1} parent=23 // pred_check
          %p180 = pneg %p47
        $region26: #{tpu_custom_call.1} parent=23 // pred_check_branch
          %182 = sbr.rel (%p180) target = $region28
        $region27: #{tpu_custom_call.1} parent=23 // pred_region
          %s183 = smul.u32 16, %s21
          %s184 = ssub.s32 17, %s183
          %p185 = scmp.lt.s32.totalorder %s184, 16
          %s186 = scalar_select %p185, %s184, 16
          %s187 = smul.u32 128, %s186
          %p188 = scmp.lt.s32.totalorder %s20, 1
          %s189 = scalar_select %p188, %s20, 1
          %p190 = scmp.lt.s32.totalorder %s183, 16
          %s191 = scalar_select %p190, %s183, 16
          %s192 = smul.addr %s189, 17
          %s193 = sadd.s32 %s191, %s192
          %s194 = smul.addr %s193, 8
          %s195 = scalar_lea.vmem %s0, %s194
          %s196 = smul.u32 16, %s21
          %s197 = ssub.s32 17, %s196
          %p198 = scmp.lt.s32.totalorder %s197, 16
          %s199 = scalar_select %p198, %s197, 16
          %s200 = smul.u32 128, %s199
        $region28: #{tpu_custom_call.1} parent=23 // pred_fallthru
          _
        // Predicated region
        $region29: #{tpu_custom_call.1} parent=23 // pred_check
          %p201 = pneg %p79
        $region30: #{tpu_custom_call.1} parent=23 // pred_check_branch
          %203 = sbr.rel (%p201) target = $region32
        $region31: #{tpu_custom_call.1} parent=23 // pred_region
          %s204 = sadd.s32 %s21, 1
          %s205 = smul.u32 %s204, 16
          %p206 = scmp.lt.s32.totalorder %s20, 1
          %s207 = scalar_select %p206, %s20, 1
          %p208 = scmp.lt.s32.totalorder %s205, 16
          %s209 = scalar_select %p208, %s205, 16
          %s210 = smul.addr %s207, 17
          %s211 = sadd.s32 %s209, %s210
          %s212 = smul.addr %s211, 8
          %s213 = scalar_lea.vmem %s1, %s212
          %s214 = sadd.s32 %s21, 1
          %s215 = smul.u32 %s214, 16
        $region32: #{tpu_custom_call.1} parent=23 // pred_fallthru
          _
      $region24: #{tpu_custom_call.1} parent=5 // pred_fallthru
        _
      %p216 = scmp.le.s32.totalorder 1, %s13
      %p217 = scmp.lt.s32.totalorder %s13, 3
      %p218 = pnand %p216, %p217
      %p219 = pneg %p218
      // Predicated region
      $region33: #{tpu_custom_call.1} parent=5 // pred_check
        _
      $region34: #{tpu_custom_call.1} parent=5 // pred_check_branch
        %221 = sbr.rel (%p218) target = $region36
      $region35: #{tpu_custom_call.1} parent=5 // pred_region
        %s222 = ssub.s32 %s13, 1
        %s223 = smul.u32 16, %s23
        %s224 = ssub.s32 17, %s223
        %p225 = scmp.lt.s32.totalorder %s224, 16
        %s226 = scalar_select %p225, %s224, 16
        %s227 = smul.u32 128, %s226
        %p228 = scmp.lt.s32.totalorder %s22, 1
        %s229 = scalar_select %p228, %s22, 1
        %p230 = scmp.lt.s32.totalorder %s223, 16
        %s231 = scalar_select %p230, %s223, 16
        %s232 = smul.addr %s229, 17
        %s233 = sadd.s32 %s231, %s232
        %s234 = smul.addr %s233, 8
        %s235 = scalar_lea.vmem %s0, %s234
        %p236 = pneg %p53
        %p237 = pneg %p50
        %s238 = sadd.s32 %s23, 1
        %s239 = smul.u32 %s238, 16
        %p240 = scmp.lt.s32.totalorder %s22, 1
        %s241 = scalar_select %p240, %s22, 1
        %p242 = scmp.lt.s32.totalorder %s239, 16
        %s243 = scalar_select %p242, %s239, 16
        %s244 = smul.addr %s241, 17
        %s245 = sadd.s32 %s243, %s244
        %s246 = smul.addr %s245, 8
        %s247 = scalar_lea.vmem %s1, %s246
        %p248 = pneg %p85
        %p249 = pneg %p82
        %p250 = pneg %p106
        %p251 = pneg %p103
        %p252 = pneg %p127
        %p253 = pneg %p124
        %p254 = pneg %p155
        %p255 = pneg %p152
        %s256 = sand.u32 %s142, 1
        %s257 = scalar_lea.sflag [#allocation3], %s256
        %s258 = sand.u32 %s142, 1
        %s259 = smul.addr %s258, 128
        %s260 = scalar_lea.vmem [#allocation2], %s259
        %s261 = smul.u32 16, %s23
        %s262 = ssub.s32 17, %s261
        %p263 = scmp.lt.s32.totalorder %s262, 16
        %s264 = scalar_select %p263, %s262, 16
        %s265 = smul.u32 128, %s264
        %p266 = scmp.lt.s32.totalorder %s22, 1
        %s267 = scalar_select %p266, %s22, 1
        %p268 = scmp.lt.s32.totalorder %s261, 16
        %s269 = scalar_select %p268, %s261, 16
        %s270 = smul.addr %s267, 17
        %s271 = sadd.s32 %s269, %s270
        %s272 = smul.addr %s271, 8
        %s273 = scalar_lea.vmem %s0, %s272
        %s274 = smul.u32 16, %s23
        %s275 = ssub.s32 17, %s274
        %p276 = scmp.lt.s32.totalorder %s275, 16
        %s277 = scalar_select %p276, %s275, 16
        %s278 = smul.u32 128, %s277
        %s279 = sadd.s32 %s23, 1
        %s280 = smul.u32 %s279, 16
        %p281 = scmp.lt.s32.totalorder %s22, 1
        %s282 = scalar_select %p281, %s22, 1
        %p283 = scmp.lt.s32.totalorder %s280, 16
        %s284 = scalar_select %p283, %s280, 16
        %s285 = smul.addr %s282, 17
        %s286 = sadd.s32 %s284, %s285
        %s287 = smul.addr %s286, 8
        %s288 = scalar_lea.vmem %s1, %s287
        %s289 = sadd.s32 %s23, 1
        %s290 = smul.u32 %s289, 16
        %v292 = vld [vmem:[%s273] sm:$0xff]
        %v293 = vld [vmem:[%s273 + $0x8] sm:$0xff]
        %v294 = vld [vmem:[%s273 + $0x10] sm:$0xff]
        %v295 = vld [vmem:[%s273 + $0x18] sm:$0xff]
        %v296 = vld [vmem:[%s273 + $0x20] sm:$0xff]
        %v297 = vld [vmem:[%s273 + $0x28] sm:$0xff]
        %v298 = vld [vmem:[%s273 + $0x30] sm:$0xff]
        %v299 = vld [vmem:[%s273 + $0x38] sm:$0xff]
        %v300 = vld [vmem:[%s273 + $0x40] sm:$0xff]
        %v301 = vld [vmem:[%s273 + $0x48] sm:$0xff]
        %v302 = vld [vmem:[%s273 + $0x50] sm:$0xff]
        %v303 = vld [vmem:[%s273 + $0x58] sm:$0xff]
        %v304 = vld [vmem:[%s273 + $0x60] sm:$0xff]
        %v305 = vld [vmem:[%s273 + $0x68] sm:$0xff]
        %v306 = vld [vmem:[%s273 + $0x70] sm:$0xff]
        %v307 = vld [vmem:[%s273 + $0x78] sm:$0xff]
        %v308 = vld [vmem:[%s288] sm:$0xff]
        %v309 = vpack.c.bf16 %v293, %v292
        %v310 = vpack.c.bf16 %v295, %v294
        %v311 = vpack.c.bf16 %v297, %v296
        %v312 = vpack.c.bf16 %v299, %v298
        %v313 = vpack.c.bf16 %v301, %v300
        %v314 = vpack.c.bf16 %v303, %v302
        %v315 = vpack.c.bf16 %v305, %v304
        %v316 = vpack.c.bf16 %v307, %v306
        %v317 = vpack.c.bf16 %v308, %v308
        %vm318 = vsmask.f32 7424
        %v320 = vshrl.u32 %v309, 16
        %v322 = vshll.u32 %v309, 16
        %v324 = vrot.slane %v322, 1
        %v325 = vor.u32 %v320, %v324
        %v327 = vshll.u32 %v310, 16
        %v329 = vrot.slane %v327, 1
        %v330 = vsel %vm318, %v325, %v329
        %v331 = vshrl.u32 %v310, 16
        %v333 = vor.u32 %v331, %v329
        %v335 = vshll.u32 %v311, 16
        %v337 = vrot.slane %v335, 1
        %v338 = vsel %vm318, %v333, %v337
        %v339 = vshrl.u32 %v311, 16
        %v341 = vor.u32 %v339, %v337
        %v343 = vshll.u32 %v312, 16
        %v345 = vrot.slane %v343, 1
        %v346 = vsel %vm318, %v341, %v345
        %v347 = vshrl.u32 %v312, 16
        %v349 = vor.u32 %v347, %v345
        %v351 = vshll.u32 %v313, 16
        %v353 = vrot.slane %v351, 1
        %v354 = vsel %vm318, %v349, %v353
        %v355 = vshrl.u32 %v313, 16
        %v357 = vor.u32 %v355, %v353
        %v359 = vshll.u32 %v314, 16
        %v361 = vrot.slane %v359, 1
        %v362 = vsel %vm318, %v357, %v361
        %v363 = vshrl.u32 %v314, 16
        %v365 = vor.u32 %v363, %v361
        %v367 = vshll.u32 %v315, 16
        %v369 = vrot.slane %v367, 1
        %v370 = vsel %vm318, %v365, %v369
        %v371 = vshrl.u32 %v315, 16
        %v373 = vor.u32 %v371, %v369
        %v375 = vshll.u32 %v316, 16
        %v377 = vrot.slane %v375, 1
        %v378 = vsel %vm318, %v373, %v377
        %v379 = vshrl.u32 %v316, 16
        %v381 = vor.u32 %v379, %v377
        %v383 = vshll.u32 %v317, 16
        %v385 = vrot.slane %v383, 1
        %v386 = vsel %vm318, %v381, %v385
        %387 = vrot.lane.b32.xlu0 %v330, 32
        %v388 = vpop.permute.xlu0 %387
        %389 = vrot.lane.b32.xlu0 %v338, 32
        %v390 = vpop.permute.xlu0 %389
        %391 = vrot.lane.b32.xlu0 %v346, 32
        %v392 = vpop.permute.xlu0 %391
        %393 = vrot.lane.b32.xlu0 %v354, 32
        %v394 = vpop.permute.xlu0 %393
        %395 = vrot.lane.b32.xlu0 %v362, 32
        %v396 = vpop.permute.xlu0 %395
        %397 = vrot.lane.b32.xlu0 %v370, 32
        %v398 = vpop.permute.xlu0 %397
        %399 = vrot.lane.b32.xlu0 %v378, 32
        %v400 = vpop.permute.xlu0 %399
        %401 = vrot.lane.b32.xlu0 %v386, 32
        %v402 = vpop.permute.xlu0 %401
        %vm412 = vcmask 1046528
        %v413 = vrot.slane %v309, 1
        %v414 = vrot.slane %v310, 1
        %v415 = vsel %vm412, %v413, %v414
        %v416 = vrot.slane %v311, 1
        %v417 = vsel %vm412, %v414, %v416
        %v418 = vrot.slane %v312, 1
        %v419 = vsel %vm412, %v416, %v418
        %v420 = vrot.slane %v313, 1
        %v421 = vsel %vm412, %v418, %v420
        %v422 = vrot.slane %v314, 1
        %v423 = vsel %vm412, %v420, %v422
        %v424 = vrot.slane %v315, 1
        %v425 = vsel %vm412, %v422, %v424
        %v426 = vrot.slane %v316, 1
        %v427 = vsel %vm412, %v424, %v426
        %v428 = vrot.slane %v317, 1
        %v429 = vsel %vm412, %v426, %v428
        %430 = vrot.lane.b32.xlu0 %v415, 64
        %v431 = vpop.permute.xlu0 %430
        %432 = vrot.lane.b32.xlu0 %v417, 64
        %v433 = vpop.permute.xlu0 %432
        %434 = vrot.lane.b32.xlu0 %v419, 64
        %v435 = vpop.permute.xlu0 %434
        %436 = vrot.lane.b32.xlu0 %v421, 64
        %v437 = vpop.permute.xlu0 %436
        %438 = vrot.lane.b32.xlu0 %v423, 64
        %v439 = vpop.permute.xlu0 %438
        %440 = vrot.lane.b32.xlu0 %v425, 64
        %v441 = vpop.permute.xlu0 %440
        %442 = vrot.lane.b32.xlu0 %v427, 64
        %v443 = vpop.permute.xlu0 %442
        %444 = vrot.lane.b32.xlu0 %v429, 64
        %v445 = vpop.permute.xlu0 %444
        %vm446 = vsmask.f32 6400
        %v447 = vrot.slane %v320, 1
        %v448 = vrot.slane %v322, 2
        %v449 = vor.u32 %v447, %v448
        %v450 = vrot.slane %v331, 1
        %v451 = vrot.slane %v327, 2
        %v452 = vor.u32 %v450, %v451
        %v453 = vsel %vm446, %v449, %v452
        %v454 = vrot.slane %v339, 1
        %v455 = vrot.slane %v335, 2
        %v456 = vor.u32 %v454, %v455
        %v457 = vsel %vm446, %v452, %v456
        %v458 = vrot.slane %v347, 1
        %v459 = vrot.slane %v343, 2
        %v460 = vor.u32 %v458, %v459
        %v461 = vsel %vm446, %v456, %v460
        %v462 = vrot.slane %v355, 1
        %v463 = vrot.slane %v351, 2
        %v464 = vor.u32 %v462, %v463
        %v465 = vsel %vm446, %v460, %v464
        %v466 = vrot.slane %v363, 1
        %v467 = vrot.slane %v359, 2
        %v468 = vor.u32 %v466, %v467
        %v469 = vsel %vm446, %v464, %v468
        %v470 = vrot.slane %v371, 1
        %v471 = vrot.slane %v367, 2
        %v472 = vor.u32 %v470, %v471
        %v473 = vsel %vm446, %v468, %v472
        %v474 = vrot.slane %v379, 1
        %v475 = vrot.slane %v375, 2
        %v476 = vor.u32 %v474, %v475
        %v477 = vsel %vm446, %v472, %v476
        %v478 = vshrl.u32 %v317, 16
        %v480 = vrot.slane %v478, 1
        %v481 = vrot.slane %v383, 2
        %v482 = vor.u32 %v480, %v481
        %v483 = vsel %vm446, %v476, %v482
        %484 = vrot.lane.b32.xlu0 %v453, 96
        %v485 = vpop.permute.xlu0 %484
        %486 = vrot.lane.b32.xlu0 %v457, 96
        %v487 = vpop.permute.xlu0 %486
        %488 = vrot.lane.b32.xlu0 %v461, 96
        %v489 = vpop.permute.xlu0 %488
        %490 = vrot.lane.b32.xlu0 %v465, 96
        %v491 = vpop.permute.xlu0 %490
        %492 = vrot.lane.b32.xlu0 %v469, 96
        %v493 = vpop.permute.xlu0 %492
        %494 = vrot.lane.b32.xlu0 %v473, 96
        %v495 = vpop.permute.xlu0 %494
        %496 = vrot.lane.b32.xlu0 %v477, 96
        %v497 = vpop.permute.xlu0 %496
        %498 = vrot.lane.b32.xlu0 %v483, 96
        %v499 = vpop.permute.xlu0 %498
        %vm500 = vcmask 261120
        %v502 = vsel %vm500, %v309, %v388
        %v504 = vsel %vm500, %v310, %v390
        %v506 = vsel %vm500, %v311, %v392
        %v508 = vsel %vm500, %v312, %v394
        %v510 = vsel %vm500, %v313, %v396
        %v512 = vsel %vm500, %v314, %v398
        %v514 = vsel %vm500, %v315, %v400
        %v516 = vsel %vm500, %v316, %v402
        %vm517 = vcmask 523264
        %v519 = vsel %vm517, %v502, %v431
        %v521 = vsel %vm517, %v504, %v433
        %v523 = vsel %vm517, %v506, %v435
        %v525 = vsel %vm517, %v508, %v437
        %v527 = vsel %vm517, %v510, %v439
        %v529 = vsel %vm517, %v512, %v441
        %v531 = vsel %vm517, %v514, %v443
        %v533 = vsel %vm517, %v516, %v445
        %vm534 = vcmask 785408
        %v536 = vsel %vm534, %v519, %v485
        %v539 = vsel %vm534, %v521, %v487
        %v542 = vsel %vm534, %v523, %v489
        %v545 = vsel %vm534, %v525, %v491
        %v548 = vsel %vm534, %v527, %v493
        %v551 = vsel %vm534, %v529, %v495
        %v554 = vsel %vm534, %v531, %v497
        %v557 = vsel %vm534, %v533, %v499
        %v559 = vld [vmem:[%s2] sm:$0xff]
        %v560 = vld [vmem:[%s2 + $0x8] sm:$0xff]
        %v561 = vld [vmem:[%s2 + $0x10] sm:$0xff]
        %v562 = vld [vmem:[%s2 + $0x18] sm:$0xff]
        %v563 = vld [vmem:[%s2 + $0x20] sm:$0xff]
        %v564 = vld [vmem:[%s2 + $0x28] sm:$0xff]
        %v565 = vld [vmem:[%s2 + $0x30] sm:$0xff]
        %v566 = vld [vmem:[%s2 + $0x38] sm:$0xff]
        %v567 = vld [vmem:[%s2 + $0x40] sm:$0xff]
        %v568 = vld [vmem:[%s2 + $0x48] sm:$0xff]
        %v569 = vld [vmem:[%s2 + $0x50] sm:$0xff]
        %v570 = vld [vmem:[%s2 + $0x58] sm:$0xff]
        %v571 = vld [vmem:[%s2 + $0x60] sm:$0xff]
        %v572 = vld [vmem:[%s2 + $0x68] sm:$0xff]
        %v573 = vld [vmem:[%s2 + $0x70] sm:$0xff]
        %v574 = vld [vmem:[%s2 + $0x78] sm:$0xff]
        %v591 = vunpack.c.l.b16 %v559
        %v592 = vunpack.c.h.b16 %v559
        %v593 = vunpack.c.l.b16 %v560
        %v594 = vunpack.c.h.b16 %v560
        %v595 = vunpack.c.l.b16 %v561
        %v596 = vunpack.c.h.b16 %v561
        %v597 = vunpack.c.l.b16 %v562
        %v598 = vunpack.c.h.b16 %v562
        %v599 = vunpack.c.l.b16 %v563
        %v600 = vunpack.c.h.b16 %v563
        %v601 = vunpack.c.l.b16 %v564
        %v602 = vunpack.c.h.b16 %v564
        %v603 = vunpack.c.l.b16 %v565
        %v604 = vunpack.c.h.b16 %v565
        %v605 = vunpack.c.l.b16 %v566
        %v606 = vunpack.c.h.b16 %v566
        %v607 = vunpack.c.l.b16 %v567
        %v608 = vunpack.c.h.b16 %v567
        %v609 = vunpack.c.l.b16 %v568
        %v610 = vunpack.c.h.b16 %v568
        %v611 = vunpack.c.l.b16 %v569
        %v612 = vunpack.c.h.b16 %v569
        %v613 = vunpack.c.l.b16 %v570
        %v614 = vunpack.c.h.b16 %v570
        %v615 = vunpack.c.l.b16 %v571
        %v616 = vunpack.c.h.b16 %v571
        %v617 = vunpack.c.l.b16 %v572
        %v618 = vunpack.c.h.b16 %v572
        %v619 = vunpack.c.l.b16 %v573
        %v620 = vunpack.c.h.b16 %v573
        %v621 = vunpack.c.l.b16 %v574
        %v622 = vunpack.c.h.b16 %v574
        %v623 = vpack.c.b16 %v593, %v591
        %v624 = vpack.c.b16 %v594, %v592
        %v625 = vpack.c.b16 %v597, %v595
        %v626 = vpack.c.b16 %v598, %v596
        %v627 = vpack.c.b16 %v601, %v599
        %v628 = vpack.c.b16 %v602, %v600
        %v629 = vpack.c.b16 %v605, %v603
        %v630 = vpack.c.b16 %v606, %v604
        %v631 = vpack.c.b16 %v609, %v607
        %v632 = vpack.c.b16 %v610, %v608
        %v633 = vpack.c.b16 %v613, %v611
        %v634 = vpack.c.b16 %v614, %v612
        %v635 = vpack.c.b16 %v617, %v615
        %v636 = vpack.c.b16 %v618, %v616
        %v637 = vpack.c.b16 %v621, %v619
        %v638 = vpack.c.b16 %v622, %v620
        %655 = vmatprep.subr.bf16.mxu0 %v624
        %656 = vmatpush1.bf16.msra.mxu0 %v623
        %657 = vmatprep.subr.bf16.mxu0 %v626
        %658 = vmatpush1.bf16.msra.mxu0 %v625
        %659 = vmatprep.subr.bf16.mxu0 %v628
        %660 = vmatpush1.bf16.msra.mxu0 %v627
        %661 = vmatprep.subr.bf16.mxu0 %v630
        %662 = vmatpush1.bf16.msra.mxu0 %v629
        %663 = vmatprep.subr.bf16.mxu0 %v632
        %664 = vmatpush1.bf16.msra.mxu0 %v631
        %665 = vmatprep.subr.bf16.mxu0 %v634
        %666 = vmatpush1.bf16.msra.mxu0 %v633
        %667 = vmatprep.subr.bf16.mxu0 %v636
        %668 = vmatpush1.bf16.msra.mxu0 %v635
        %669 = vmatprep.subr.bf16.mxu0 %v638
        %670 = vmatpush1.bf16.msra.mxu0 %v637
        %671 = vmatprep.subr.bf16.mxu0 0
        %672 = vmatpush1.bf16.msra.mxu0 0
        %673 = vmatprep.subr.bf16.mxu0 0
        %674 = vmatpush1.bf16.msra.mxu0 0
        %675 = vmatprep.subr.bf16.mxu0 0
        %676 = vmatpush1.bf16.msra.mxu0 0
        %677 = vmatprep.subr.bf16.mxu0 0
        %678 = vmatpush1.bf16.msra.mxu0 0
        %679 = vmatprep.subr.bf16.mxu0 0
        %680 = vmatpush1.bf16.msra.mxu0 0
        %681 = vmatprep.subr.bf16.mxu0 0
        %682 = vmatpush1.bf16.msra.mxu0 0
        %683 = vmatprep.subr.bf16.mxu0 0
        %684 = vmatpush1.bf16.msra.mxu0 0
        %685 = vmatprep.subr.bf16.mxu0 0
        %686 = vmatpush1.bf16.msra.mxu0 0
        %687 = vmatprep.mubr.bf16.mxu0 0
        %688 = vmatmul.mubr.bf16.gmra.mrb[0].mxu0 %v536
        %v689 = vpop.f32.mrb[0].mxu0
        %v690 = vadd.f32 0.0, %v689
        %v691 = vpop.f32.mrb[0].mxu0
        %v692 = vadd.f32 0.0, %v691
        %v693 = vpop.f32.mrb[0].mxu0
        %v694 = vadd.f32 0.0, %v693
        %v695 = vpop.f32.mrb[0].mxu0
        %v696 = vadd.f32 0.0, %v695
        %697 = vmatprep.mubr.bf16.mxu0 0
        %698 = vmatmul.mubr.bf16.gmra.mrb[0].mxu0 %v539
        %v699 = vpop.f32.mrb[0].mxu0
        %v700 = vadd.f32 0.0, %v699
        %v701 = vpop.f32.mrb[0].mxu0
        %v702 = vadd.f32 0.0, %v701
        %v703 = vpop.f32.mrb[0].mxu0
        %v704 = vadd.f32 0.0, %v703
        %v705 = vpop.f32.mrb[0].mxu0
        %v706 = vadd.f32 0.0, %v705
        %707 = vmatprep.mubr.bf16.mxu0 0
        %708 = vmatmul.mubr.bf16.gmra.mrb[0].mxu0 %v542
        %v709 = vpop.f32.mrb[0].mxu0
        %v710 = vadd.f32 0.0, %v709
        %v711 = vpop.f32.mrb[0].mxu0
        %v712 = vadd.f32 0.0, %v711
        %v713 = vpop.f32.mrb[0].mxu0
        %v714 = vadd.f32 0.0, %v713
        %v715 = vpop.f32.mrb[0].mxu0
        %v716 = vadd.f32 0.0, %v715
        %717 = vmatprep.mubr.bf16.mxu0 0
        %718 = vmatmul.mubr.bf16.gmra.mrb[0].mxu0 %v545
        %v719 = vpop.f32.mrb[0].mxu0
        %v720 = vadd.f32 0.0, %v719
        %v721 = vpop.f32.mrb[0].mxu0
        %v722 = vadd.f32 0.0, %v721
        %v723 = vpop.f32.mrb[0].mxu0
        %v724 = vadd.f32 0.0, %v723
        %v725 = vpop.f32.mrb[0].mxu0
        %v726 = vadd.f32 0.0, %v725
        %727 = vmatprep.mubr.bf16.mxu0 0
        %728 = vmatmul.mubr.bf16.gmra.mrb[0].mxu0 %v548
        %v729 = vpop.f32.mrb[0].mxu0
        %v730 = vadd.f32 0.0, %v729
        %v731 = vpop.f32.mrb[0].mxu0
        %v732 = vadd.f32 0.0, %v731
        %v733 = vpop.f32.mrb[0].mxu0
        %v734 = vadd.f32 0.0, %v733
        %v735 = vpop.f32.mrb[0].mxu0
        %v736 = vadd.f32 0.0, %v735
        %737 = vmatprep.mubr.bf16.mxu0 0
        %738 = vmatmul.mubr.bf16.gmra.mrb[0].mxu0 %v551
        %v739 = vpop.f32.mrb[0].mxu0
        %v740 = vadd.f32 0.0, %v739
        %v741 = vpop.f32.mrb[0].mxu0
        %v742 = vadd.f32 0.0, %v741
        %v743 = vpop.f32.mrb[0].mxu0
        %v744 = vadd.f32 0.0, %v743
        %v745 = vpop.f32.mrb[0].mxu0
        %v746 = vadd.f32 0.0, %v745
        %747 = vmatprep.mubr.bf16.mxu0 0
        %748 = vmatmul.mubr.bf16.gmra.mrb[0].mxu0 %v554
        %v749 = vpop.f32.mrb[0].mxu0
        %v750 = vadd.f32 0.0, %v749
        %v751 = vpop.f32.mrb[0].mxu0
        %v752 = vadd.f32 0.0, %v751
        %v753 = vpop.f32.mrb[0].mxu0
        %v754 = vadd.f32 0.0, %v753
        %v755 = vpop.f32.mrb[0].mxu0
        %v756 = vadd.f32 0.0, %v755
        %757 = vmatprep.mubr.bf16.mxu0 0
        %758 = vmatmul.mubr.bf16.gmra.mrb[0].mxu0 %v557
        %v759 = vpop.f32.mrb[0].mxu0
        %v760 = vadd.f32 0.0, %v759
        %v761 = vpop.f32.mrb[0].mxu0
        %v762 = vadd.f32 0.0, %v761
        %v763 = vpop.f32.mrb[0].mxu0
        %v764 = vadd.f32 0.0, %v763
        %v765 = vpop.f32.mrb[0].mxu0
        %v766 = vadd.f32 0.0, %v765
        %767 = vdwg.mxu0
        %v768 = vmul.f32 %v690, %v690
        %v769 = vmul.f32 %v694, %v694
        %v770 = vmul.f32 %v700, %v700
        %v771 = vmul.f32 %v704, %v704
        %v772 = vmul.f32 %v710, %v710
        %v773 = vmul.f32 %v714, %v714
        %v774 = vmul.f32 %v720, %v720
        %v775 = vmul.f32 %v724, %v724
        %v776 = vmul.f32 %v730, %v730
        %v777 = vmul.f32 %v734, %v734
        %v778 = vmul.f32 %v740, %v740
        %v779 = vmul.f32 %v744, %v744
        %v780 = vmul.f32 %v750, %v750
        %v781 = vmul.f32 %v754, %v754
        %v782 = vmul.f32 %v760, %v760
        %v783 = vmul.f32 %v764, %v764
        %v784 = vmul.f32 %v692, %v692
        %v785 = vmul.f32 %v696, %v696
        %v786 = vmul.f32 %v702, %v702
        %v787 = vmul.f32 %v706, %v706
        %v788 = vmul.f32 %v712, %v712
        %v789 = vmul.f32 %v716, %v716
        %v790 = vmul.f32 %v722, %v722
        %v791 = vmul.f32 %v726, %v726
        %v792 = vmul.f32 %v732, %v732
        %v793 = vmul.f32 %v736, %v736
        %v794 = vmul.f32 %v742, %v742
        %v795 = vmul.f32 %v746, %v746
        %v796 = vmul.f32 %v752, %v752
        %v797 = vmul.f32 %v756, %v756
        %v798 = vmul.f32 %v762, %v762
        %v799 = vmul.f32 %v766, %v766
        %v800 = vadd.f32 %v768, %v784
        %v801 = vadd.f32 %v769, %v785
        %v802 = vadd.f32 %v770, %v786
        %v803 = vadd.f32 %v771, %v787
        %v804 = vadd.f32 %v772, %v788
        %v805 = vadd.f32 %v773, %v789
        %v806 = vadd.f32 %v774, %v790
        %v807 = vadd.f32 %v775, %v791
        %v808 = vadd.f32 %v776, %v792
        %v809 = vadd.f32 %v777, %v793
        %v810 = vadd.f32 %v778, %v794
        %v811 = vadd.f32 %v779, %v795
        %v812 = vadd.f32 %v780, %v796
        %v813 = vadd.f32 %v781, %v797
        %v814 = vadd.f32 %v782, %v798
        %v815 = vadd.f32 %v783, %v799
        %v816 = vrsqrt.pop %v800
        %v817 = vmul.f32 %v800, %v816
        %vm818 = vcmp.eq.f32.partialorder %v800, inf
        %v819 = vsel %vm818, %v800, %v817
        %vm820 = vcmp.eq.f32.partialorder %v800, 0.0
        %v821 = vand.u32 %v800, 2147483648
        %v822 = vsel %vm820, %v821, %v819
        %v823 = vrsqrt.pop %v801
        %v824 = vmul.f32 %v801, %v823
        %vm825 = vcmp.eq.f32.partialorder %v801, inf
        %v826 = vsel %vm825, %v801, %v824
        %vm827 = vcmp.eq.f32.partialorder %v801, 0.0
        %v828 = vand.u32 %v801, 2147483648
        %v829 = vsel %vm827, %v828, %v826
        %v830 = vrsqrt.pop %v802
        %v831 = vmul.f32 %v802, %v830
        %vm832 = vcmp.eq.f32.partialorder %v802, inf
        %v833 = vsel %vm832, %v802, %v831
        %vm834 = vcmp.eq.f32.partialorder %v802, 0.0
        %v835 = vand.u32 %v802, 2147483648
        %v836 = vsel %vm834, %v835, %v833
        %v837 = vrsqrt.pop %v803
        %v838 = vmul.f32 %v803, %v837
        %vm839 = vcmp.eq.f32.partialorder %v803, inf
        %v840 = vsel %vm839, %v803, %v838
        %vm841 = vcmp.eq.f32.partialorder %v803, 0.0
        %v842 = vand.u32 %v803, 2147483648
        %v843 = vsel %vm841, %v842, %v840
        %v844 = vrsqrt.pop %v804
        %v845 = vmul.f32 %v804, %v844
        %vm846 = vcmp.eq.f32.partialorder %v804, inf
        %v847 = vsel %vm846, %v804, %v845
        %vm848 = vcmp.eq.f32.partialorder %v804, 0.0
        %v849 = vand.u32 %v804, 2147483648
        %v850 = vsel %vm848, %v849, %v847
        %v851 = vrsqrt.pop %v805
        %v852 = vmul.f32 %v805, %v851
        %vm853 = vcmp.eq.f32.partialorder %v805, inf
        %v854 = vsel %vm853, %v805, %v852
        %vm855 = vcmp.eq.f32.partialorder %v805, 0.0
        %v856 = vand.u32 %v805, 2147483648
        %v857 = vsel %vm855, %v856, %v854
        %v858 = vrsqrt.pop %v806
        %v859 = vmul.f32 %v806, %v858
        %vm860 = vcmp.eq.f32.partialorder %v806, inf
        %v861 = vsel %vm860, %v806, %v859
        %vm862 = vcmp.eq.f32.partialorder %v806, 0.0
        %v863 = vand.u32 %v806, 2147483648
        %v864 = vsel %vm862, %v863, %v861
        %v865 = vrsqrt.pop %v807
        %v866 = vmul.f32 %v807, %v865
        %vm867 = vcmp.eq.f32.partialorder %v807, inf
        %v868 = vsel %vm867, %v807, %v866
        %vm869 = vcmp.eq.f32.partialorder %v807, 0.0
        %v870 = vand.u32 %v807, 2147483648
        %v871 = vsel %vm869, %v870, %v868
        %v872 = vrsqrt.pop %v808
        %v873 = vmul.f32 %v808, %v872
        %vm874 = vcmp.eq.f32.partialorder %v808, inf
        %v875 = vsel %vm874, %v808, %v873
        %vm876 = vcmp.eq.f32.partialorder %v808, 0.0
        %v877 = vand.u32 %v808, 2147483648
        %v878 = vsel %vm876, %v877, %v875
        %v879 = vrsqrt.pop %v809
        %v880 = vmul.f32 %v809, %v879
        %vm881 = vcmp.eq.f32.partialorder %v809, inf
        %v882 = vsel %vm881, %v809, %v880
        %vm883 = vcmp.eq.f32.partialorder %v809, 0.0
        %v884 = vand.u32 %v809, 2147483648
        %v885 = vsel %vm883, %v884, %v882
        %v886 = vrsqrt.pop %v810
        %v887 = vmul.f32 %v810, %v886
        %vm888 = vcmp.eq.f32.partialorder %v810, inf
        %v889 = vsel %vm888, %v810, %v887
        %vm890 = vcmp.eq.f32.partialorder %v810, 0.0
        %v891 = vand.u32 %v810, 2147483648
        %v892 = vsel %vm890, %v891, %v889
        %v893 = vrsqrt.pop %v811
        %v894 = vmul.f32 %v811, %v893
        %vm895 = vcmp.eq.f32.partialorder %v811, inf
        %v896 = vsel %vm895, %v811, %v894
        %vm897 = vcmp.eq.f32.partialorder %v811, 0.0
        %v898 = vand.u32 %v811, 2147483648
        %v899 = vsel %vm897, %v898, %v896
        %v900 = vrsqrt.pop %v812
        %v901 = vmul.f32 %v812, %v900
        %vm902 = vcmp.eq.f32.partialorder %v812, inf
        %v903 = vsel %vm902, %v812, %v901
        %vm904 = vcmp.eq.f32.partialorder %v812, 0.0
        %v905 = vand.u32 %v812, 2147483648
        %v906 = vsel %vm904, %v905, %v903
        %v907 = vrsqrt.pop %v813
        %v908 = vmul.f32 %v813, %v907
        %vm909 = vcmp.eq.f32.partialorder %v813, inf
        %v910 = vsel %vm909, %v813, %v908
        %vm911 = vcmp.eq.f32.partialorder %v813, 0.0
        %v912 = vand.u32 %v813, 2147483648
        %v913 = vsel %vm911, %v912, %v910
        %v914 = vrsqrt.pop %v814
        %v915 = vmul.f32 %v814, %v914
        %vm916 = vcmp.eq.f32.partialorder %v814, inf
        %v917 = vsel %vm916, %v814, %v915
        %vm918 = vcmp.eq.f32.partialorder %v814, 0.0
        %v919 = vand.u32 %v814, 2147483648
        %v920 = vsel %vm918, %v919, %v917
        %v921 = vrsqrt.pop %v815
        %v922 = vmul.f32 %v815, %v921
        %vm923 = vcmp.eq.f32.partialorder %v815, inf
        %v924 = vsel %vm923, %v815, %v922
        %vm925 = vcmp.eq.f32.partialorder %v815, 0.0
        %v926 = vand.u32 %v815, 2147483648
        %v927 = vsel %vm925, %v926, %v924
        %v928 = vpack.c.bf16 %v829, %v822
        %v929 = vpack.c.bf16 %v843, %v836
        %v930 = vpack.c.bf16 %v857, %v850
        %v931 = vpack.c.bf16 %v871, %v864
        %v932 = vpack.c.bf16 %v885, %v878
        %v933 = vpack.c.bf16 %v899, %v892
        %v934 = vpack.c.bf16 %v913, %v906
        %v935 = vpack.c.bf16 %v927, %v920
        %v936 = vld [vmem:[%s3] sm:$0xf]
        %v937 = vld [vmem:[%s3 + $0x4] sm:$0xf]
        %v938 = vld [vmem:[%s3 + $0x8] sm:$0xf]
        %v939 = vld [vmem:[%s3 + $0xc] sm:$0xf]
        %v940 = vld [vmem:[%s3 + $0x10] sm:$0xf]
        %v941 = vld [vmem:[%s3 + $0x14] sm:$0xf]
        %v942 = vld [vmem:[%s3 + $0x18] sm:$0xf]
        %v943 = vld [vmem:[%s3 + $0x1c] sm:$0xf]
        %v944 = vld [vmem:[%s3 + $0x20] sm:$0xf]
        %v945 = vld [vmem:[%s3 + $0x24] sm:$0xf]
        %v946 = vld [vmem:[%s3 + $0x28] sm:$0xf]
        %v947 = vld [vmem:[%s3 + $0x2c] sm:$0xf]
        %v948 = vld [vmem:[%s3 + $0x30] sm:$0xf]
        %v949 = vld [vmem:[%s3 + $0x34] sm:$0xf]
        %v950 = vld [vmem:[%s3 + $0x38] sm:$0xf]
        %v951 = vld [vmem:[%s3 + $0x3c] sm:$0xf]
        %v968 = vunpack.c.l.b16 %v936
        %v969 = vunpack.c.l.b16 %v937
        %v970 = vunpack.c.l.b16 %v938
        %v971 = vunpack.c.l.b16 %v939
        %v972 = vunpack.c.l.b16 %v940
        %v973 = vunpack.c.l.b16 %v941
        %v974 = vunpack.c.l.b16 %v942
        %v975 = vunpack.c.l.b16 %v943
        %v976 = vunpack.c.l.b16 %v944
        %v977 = vunpack.c.l.b16 %v945
        %v978 = vunpack.c.l.b16 %v946
        %v979 = vunpack.c.l.b16 %v947
        %v980 = vunpack.c.l.b16 %v948
        %v981 = vunpack.c.l.b16 %v949
        %v982 = vunpack.c.l.b16 %v950
        %v983 = vunpack.c.l.b16 %v951
        %v984 = vpack.c.b16 %v969, %v968
        %v985 = vpack.c.b16 %v971, %v970
        %v986 = vpack.c.b16 %v973, %v972
        %v987 = vpack.c.b16 %v975, %v974
        %v988 = vpack.c.b16 %v977, %v976
        %v989 = vpack.c.b16 %v979, %v978
        %v990 = vpack.c.b16 %v981, %v980
        %v991 = vpack.c.b16 %v983, %v982
        %1000 = vmatprep.subr.bf16.mxu0 0
        %1001 = vmatpush1.bf16.msra.mxu0 %v984
        %1002 = vmatprep.subr.bf16.mxu0 0
        %1003 = vmatpush1.bf16.msra.mxu0 %v985
        %1004 = vmatprep.subr.bf16.mxu0 0
        %1005 = vmatpush1.bf16.msra.mxu0 %v986
        %1006 = vmatprep.subr.bf16.mxu0 0
        %1007 = vmatpush1.bf16.msra.mxu0 %v987
        %1008 = vmatprep.subr.bf16.mxu0 0
        %1009 = vmatpush1.bf16.msra.mxu0 %v988
        %1010 = vmatprep.subr.bf16.mxu0 0
        %1011 = vmatpush1.bf16.msra.mxu0 %v989
        %1012 = vmatprep.subr.bf16.mxu0 0
        %1013 = vmatpush1.bf16.msra.mxu0 %v990
        %1014 = vmatprep.subr.bf16.mxu0 0
        %1015 = vmatpush1.bf16.msra.mxu0 %v991
        %1016 = vmatprep.subr.bf16.mxu0 0
        %1017 = vmatpush1.bf16.msra.mxu0 0
        %1018 = vmatprep.subr.bf16.mxu0 0
        %1019 = vmatpush1.bf16.msra.mxu0 0
        %1020 = vmatprep.subr.bf16.mxu0 0
        %1021 = vmatpush1.bf16.msra.mxu0 0
        %1022 = vmatprep.subr.bf16.mxu0 0
        %1023 = vmatpush1.bf16.msra.mxu0 0
        %1024 = vmatprep.subr.bf16.mxu0 0
        %1025 = vmatpush1.bf16.msra.mxu0 0
        %1026 = vmatprep.subr.bf16.mxu0 0
        %1027 = vmatpush1.bf16.msra.mxu0 0
        %1028 = vmatprep.subr.bf16.mxu0 0
        %1029 = vmatpush1.bf16.msra.mxu0 0
        %1030 = vmatprep.subr.bf16.mxu0 0
        %1031 = vmatpush1.bf16.msra.mxu0 0
        %1032 = vmatprep.mubr.bf16.mxu0 0
        %1033 = vmatmul.mubr.bf16.gmra.mrb[0].mxu0 %v928
        %v1034 = vpop.f32.mrb[0].mxu0
        %v1035 = vadd.f32 0.0, %v1034
        %v1036 = vpop.f32.mrb[0].mxu0
        %v1037 = vpop.f32.mrb[0].mxu0
        %v1038 = vadd.f32 0.0, %v1037
        %v1039 = vpop.f32.mrb[0].mxu0
        %1040 = vmatprep.mubr.bf16.mxu0 0
        %1041 = vmatmul.mubr.bf16.gmra.mrb[0].mxu0 %v929
        %v1042 = vpop.f32.mrb[0].mxu0
        %v1043 = vadd.f32 0.0, %v1042
        %v1044 = vpop.f32.mrb[0].mxu0
        %v1045 = vpop.f32.mrb[0].mxu0
        %v1046 = vadd.f32 0.0, %v1045
        %v1047 = vpop.f32.mrb[0].mxu0
        %1048 = vmatprep.mubr.bf16.mxu0 0
        %1049 = vmatmul.mubr.bf16.gmra.mrb[0].mxu0 %v930
        %v1050 = vpop.f32.mrb[0].mxu0
        %v1051 = vadd.f32 0.0, %v1050
        %v1052 = vpop.f32.mrb[0].mxu0
        %v1053 = vpop.f32.mrb[0].mxu0
        %v1054 = vadd.f32 0.0, %v1053
        %v1055 = vpop.f32.mrb[0].mxu0
        %1056 = vmatprep.mubr.bf16.mxu0 0
        %1057 = vmatmul.mubr.bf16.gmra.mrb[0].mxu0 %v931
        %v1058 = vpop.f32.mrb[0].mxu0
        %v1059 = vadd.f32 0.0, %v1058
        %v1060 = vpop.f32.mrb[0].mxu0
        %v1061 = vpop.f32.mrb[0].mxu0
        %v1062 = vadd.f32 0.0, %v1061
        %v1063 = vpop.f32.mrb[0].mxu0
        %1064 = vmatprep.mubr.bf16.mxu0 0
        %1065 = vmatmul.mubr.bf16.gmra.mrb[0].mxu0 %v932
        %v1066 = vpop.f32.mrb[0].mxu0
        %v1067 = vadd.f32 0.0, %v1066
        %v1068 = vpop.f32.mrb[0].mxu0
        %v1069 = vpop.f32.mrb[0].mxu0
        %v1070 = vadd.f32 0.0, %v1069
        %v1071 = vpop.f32.mrb[0].mxu0
        %1072 = vmatprep.mubr.bf16.mxu0 0
        %1073 = vmatmul.mubr.bf16.gmra.mrb[0].mxu0 %v933
        %v1074 = vpop.f32.mrb[0].mxu0
        %v1075 = vadd.f32 0.0, %v1074
        %v1076 = vpop.f32.mrb[0].mxu0
        %v1077 = vpop.f32.mrb[0].mxu0
        %v1078 = vadd.f32 0.0, %v1077
        %v1079 = vpop.f32.mrb[0].mxu0
        %1080 = vmatprep.mubr.bf16.mxu0 0
        %1081 = vmatmul.mubr.bf16.gmra.mrb[0].mxu0 %v934
        %v1082 = vpop.f32.mrb[0].mxu0
        %v1083 = vadd.f32 0.0, %v1082
        %v1084 = vpop.f32.mrb[0].mxu0
        %v1085 = vpop.f32.mrb[0].mxu0
        %v1086 = vadd.f32 0.0, %v1085
        %v1087 = vpop.f32.mrb[0].mxu0
        %1088 = vmatprep.mubr.bf16.mxu0 0
        %1089 = vmatmul.mubr.bf16.gmra.mrb[0].mxu0 %v935
        %v1090 = vpop.f32.mrb[0].mxu0
        %v1091 = vadd.f32 0.0, %v1090
        %v1092 = vpop.f32.mrb[0].mxu0
        %v1093 = vpop.f32.mrb[0].mxu0
        %v1094 = vadd.f32 0.0, %v1093
        %v1095 = vpop.f32.mrb[0].mxu0
        %1096 = vdwg.mxu0
        %v1097 = vmax.f32 %v1035, 1e-05
        %v1098 = vmax.f32 %v1038, 1e-05
        %v1099 = vmax.f32 %v1043, 1e-05
        %v1100 = vmax.f32 %v1046, 1e-05
        %v1101 = vmax.f32 %v1051, 1e-05
        %v1102 = vmax.f32 %v1054, 1e-05
        %v1103 = vmax.f32 %v1059, 1e-05
        %v1104 = vmax.f32 %v1062, 1e-05
        %v1105 = vmax.f32 %v1067, 1e-05
        %v1106 = vmax.f32 %v1070, 1e-05
        %v1107 = vmax.f32 %v1075, 1e-05
        %v1108 = vmax.f32 %v1078, 1e-05
        %v1109 = vmax.f32 %v1083, 1e-05
        %v1110 = vmax.f32 %v1086, 1e-05
        %v1111 = vmax.f32 %v1091, 1e-05
        %v1112 = vmax.f32 %v1094, 1e-05
        %v1113 = vlog2.pop %v1097
        %v1114 = vmul.f32 %v1113, 0.6931472
        %v1115 = vlog2.pop %v1098
        %v1116 = vmul.f32 %v1115, 0.6931472
        %v1117 = vlog2.pop %v1099
        %v1118 = vmul.f32 %v1117, 0.6931472
        %v1119 = vlog2.pop %v1100
        %v1120 = vmul.f32 %v1119, 0.6931472
        %v1121 = vlog2.pop %v1101
        %v1122 = vmul.f32 %v1121, 0.6931472
        %v1123 = vlog2.pop %v1102
        %v1124 = vmul.f32 %v1123, 0.6931472
        %v1125 = vlog2.pop %v1103
        %v1126 = vmul.f32 %v1125, 0.6931472
        %v1127 = vlog2.pop %v1104
        %v1128 = vmul.f32 %v1127, 0.6931472
        %v1129 = vlog2.pop %v1105
        %v1130 = vmul.f32 %v1129, 0.6931472
        %v1131 = vlog2.pop %v1106
        %v1132 = vmul.f32 %v1131, 0.6931472
        %v1133 = vlog2.pop %v1107
        %v1134 = vmul.f32 %v1133, 0.6931472
        %v1135 = vlog2.pop %v1108
        %v1136 = vmul.f32 %v1135, 0.6931472
        %v1137 = vlog2.pop %v1109
        %v1138 = vmul.f32 %v1137, 0.6931472
        %v1139 = vlog2.pop %v1110
        %v1140 = vmul.f32 %v1139, 0.6931472
        %v1141 = vlog2.pop %v1111
        %v1142 = vmul.f32 %v1141, 0.6931472
        %v1143 = vlog2.pop %v1112
        %v1144 = vmul.f32 %v1143, 0.6931472
        %v1145 = vmul.f32 %v1114, 0.4342945
        %v1146 = vmul.f32 %v1116, 0.4342945
        %v1147 = vmul.f32 %v1118, 0.4342945
        %v1148 = vmul.f32 %v1120, 0.4342945
        %v1149 = vmul.f32 %v1122, 0.4342945
        %v1150 = vmul.f32 %v1124, 0.4342945
        %v1151 = vmul.f32 %v1126, 0.4342945
        %v1152 = vmul.f32 %v1128, 0.4342945
        %v1153 = vmul.f32 %v1130, 0.4342945
        %v1154 = vmul.f32 %v1132, 0.4342945
        %v1155 = vmul.f32 %v1134, 0.4342945
        %v1156 = vmul.f32 %v1136, 0.4342945
        %v1157 = vmul.f32 %v1138, 0.4342945
        %v1158 = vmul.f32 %v1140, 0.4342945
        %v1159 = vmul.f32 %v1142, 0.4342945
        %v1160 = vmul.f32 %v1144, 0.4342945
        %1161 = vxpose.xlu0.b32.start [1/16] %v1145, 128
        %1162 = vxpose.xlu0.b32.cont [2/16] %v1146, 128
        %1163 = vxpose.xlu0.b32.cont [3/16] %v1147, 128
        %1164 = vxpose.xlu0.b32.cont [4/16] %v1148, 128
        %1165 = vxpose.xlu0.b32.cont [5/16] %v1149, 128
        %1166 = vxpose.xlu0.b32.cont [6/16] %v1150, 128
        %1167 = vxpose.xlu0.b32.cont [7/16] %v1151, 128
        %1168 = vxpose.xlu0.b32.cont [8/16] %v1152, 128
        %1169 = vxpose.xlu0.b32.cont [9/16] %v1153, 128
        %1170 = vxpose.xlu0.b32.cont [10/16] %v1154, 128
        %1171 = vxpose.xlu0.b32.cont [11/16] %v1155, 128
        %1172 = vxpose.xlu0.b32.cont [12/16] %v1156, 128
        %1173 = vxpose.xlu0.b32.cont [13/16] %v1157, 128
        %1174 = vxpose.xlu0.b32.cont [14/16] %v1158, 128
        %1175 = vxpose.xlu0.b32.cont [15/16] %v1159, 128
        %1176 = vxpose.xlu0.b32.end [16/16] %v1160, 128
        %v1177 = vpop.trf.xlu0
        %v1178 = vpop.trf.xlu0
        %v1179 = vpop.trf.xlu0
        %v1180 = vpop.trf.xlu0
        %v1181 = vpop.trf.xlu0
        %v1182 = vpop.trf.xlu0
        %v1183 = vpop.trf.xlu0
        %v1184 = vpop.trf.xlu0
        %v1185 = vpop.trf.xlu0
        %v1186 = vpop.trf.xlu0
        %v1187 = vpop.trf.xlu0
        %v1188 = vpop.trf.xlu0
        %v1189 = vpop.trf.xlu0
        %v1190 = vpop.trf.xlu0
        %v1191 = vpop.trf.xlu0
        %v1192 = vpop.trf.xlu0
        %1193 = vst [vmem:[%s260] sm:$0xff] %v1177
        %1194 = vst [vmem:[%s260 + $0x8] sm:$0xff] %v1178
        %1195 = vst [vmem:[%s260 + $0x10] sm:$0xff] %v1179
        %1196 = vst [vmem:[%s260 + $0x18] sm:$0xff] %v1180
        %1197 = vst [vmem:[%s260 + $0x20] sm:$0xff] %v1181
        %1198 = vst [vmem:[%s260 + $0x28] sm:$0xff] %v1182
        %1199 = vst [vmem:[%s260 + $0x30] sm:$0xff] %v1183
        %1200 = vst [vmem:[%s260 + $0x38] sm:$0xff] %v1184
        %1201 = vst [vmem:[%s260 + $0x40] sm:$0xff] %v1185
        %1202 = vst [vmem:[%s260 + $0x48] sm:$0xff] %v1186
        %1203 = vst [vmem:[%s260 + $0x50] sm:$0xff] %v1187
        %1204 = vst [vmem:[%s260 + $0x58] sm:$0xff] %v1188
        %1205 = vst [vmem:[%s260 + $0x60] sm:$0xff] %v1189
        %1206 = vst [vmem:[%s260 + $0x68] sm:$0xff] %v1190
        %1207 = vst [vmem:[%s260 + $0x70] sm:$0xff] %v1191
        %1208 = vst [vmem:[%s260 + $0x78] sm:$0xff] %v1192
        %s1209 = sand.u32 %s142, 1
        %s1210 = scalar_lea.sflag [#allocation3], %s1209
        %s1211 = sand.u32 %s142, 1
        %s1212 = smul.addr %s1211, 128
        %s1213 = scalar_lea.vmem [#allocation2], %s1212
        // Predicated region
        $region37: #{tpu_custom_call.1} parent=35 // pred_check
          %p1214 = pneg %p152
        $region38: #{tpu_custom_call.1} parent=35 // pred_check_branch
          %1216 = sbr.rel (%p1214) target = $region40
        $region39: #{tpu_custom_call.1} parent=35 // pred_region
          %s1218 = ssub.s32 2048, 2048
          %1219 = vsyncadd %s1210, %s1218
          %s1220 = smul.addr %s22, 16
          %s1221 = sadd.s32 %s23, %s1220
          %s1222 = smul.addr %s1221, 128
          %s1223 = scalar_lea.hbm %s4, %s1222
          %s1224 = sshll.u32 %s1213, 4
          %s1225 = int_to_ptr.vmem [resolvable:$true] %s1224
          %1230 = dma.vmem_to_hbm [thread:$0]  %s1225, 2048, %s1223, %s1210, 128, 128, 8
        $region40: #{tpu_custom_call.1} parent=35 // pred_fallthru
          _
      $region36: #{tpu_custom_call.1} parent=5 // pred_fallthru
        _
      %p1231 = scmp.le.s32.totalorder 2, %s13
      // Predicated region
      $region41: #{tpu_custom_call.1} parent=5 // pred_check
        %p1232 = pneg %p1231
      $region42: #{tpu_custom_call.1} parent=5 // pred_check_branch
        %1234 = sbr.rel (%p1232) target = $region44
      $region43: #{tpu_custom_call.1} parent=5 // pred_region
        %s1235 = ssub.s32 %s13, 2
        // Predicated region
        $region45: #{tpu_custom_call.1} parent=43 // pred_check
          %p1236 = pneg %p158
        $region46: #{tpu_custom_call.1} parent=43 // pred_check_branch
          %1238 = sbr.rel (%p1236) target = $region48
        $region47: #{tpu_custom_call.1} parent=43 // pred_region
          %s1239 = sand.u32 %s143, 1
          %s1240 = scalar_lea.sflag [#allocation3], %s1239
          %s1241 = sand.u32 %s143, 1
          %s1242 = smul.addr %s1241, 128
          %s1243 = scalar_lea.vmem [#allocation2], %s1242
          %1244 = dma.done %s1240, 2048
        $region48: #{tpu_custom_call.1} parent=43 // pred_fallthru
          _
      $region44: #{tpu_custom_call.1} parent=5 // pred_fallthru
        _
    $region6: #{tpu_custom_call.1} parent=1 // loop_footer
      %s17 = sadd.s32 1, %s13
    $region7: #{tpu_custom_call.1} parent=1 // loop_footer_branch
      %12 = sbr.rel target = $region3
    $region8: #{tpu_custom_call.1} parent=1 // loop_exit
      _
    %1245 = vsyncpa [#allocation3], 1
    %s1246 = scalar_lea.sflag [#allocation3], 1
    %1247 = vsyncpa %s1246, 1

</llo_original>
